<compile_context>
chip_gen: v5e
topology: v5e:2x2
jax: 0.10.0
libtpu: 0.0.40
codegen_flags: <defaults>
</compile_context>

<pallas_src>
import jax
import jax.numpy as jnp
import numpy as np
from jax.experimental import pallas as pl
from jax.experimental.pallas import tpu as pltpu

EPS = 1e-5  # PyTorch BatchNorm1d default eps


def tabular_kernel(x_ref, w1t_ref, b1t_ref, w2t_ref, b2t_ref, o_ref):
    # x_ref:   (12, tb)  compute_dtype   (concat([emb, cont_raw]) transposed)
    # w1t_ref: (8, 12)   compute_dtype   (BN_cont folded in)
    # b1t_ref: (8, 1)    f32
    # w2t_ref: (8, 8)    compute_dtype   (BN2 folded in)
    # b2t_ref: (8, 1)    f32
    # o_ref:   (8, tb)   f32
    x = x_ref[...]
    h = jnp.dot(w1t_ref[...], x, preferred_element_type=jnp.float32)   # (8, tb)
    h = jnp.maximum(h + b1t_ref[...], 0.0)                              # bias + ReLU
    # Dropout(fc_p): identity in eval mode.  BatchNorm1d(8) folded into W2/b2.
    h = h.astype(w2t_ref.dtype)
    o_ref[...] = (jnp.dot(w2t_ref[...], h, preferred_element_type=jnp.float32)
                  + b2t_ref[...]).astype(o_ref.dtype)


def make_params(key, emb_size, n_cont):
    """Deterministic synthetic parameters matching the PyTorch module shapes."""
    ks = jax.random.split(key, 16)
    n_emb = sum(d for _, d in emb_size)
    assert n_emb + n_cont == 12, "Linear(12, 8) requires n_emb + n_cont == 12"

    params = {}
    # Embedding tables: (num_emb, emb_dim)
    params["emb"] = [
        0.1 * jax.random.normal(ks[i], (num_emb, emb_dim), jnp.float32)
        for i, (num_emb, emb_dim) in enumerate(emb_size)
    ]
    # bn_cont = BatchNorm1d(n_cont): gamma, beta, running_mean, running_var
    params["bnc_g"] = 1.0 + 0.1 * jax.random.normal(ks[4], (1, n_cont), jnp.float32)
    params["bnc_b"] = 0.1 * jax.random.normal(ks[5], (1, n_cont), jnp.float32)
    params["bnc_m"] = 0.1 * jax.random.normal(ks[6], (1, n_cont), jnp.float32)
    params["bnc_v"] = 1.0 + 0.1 * jax.random.uniform(ks[7], (1, n_cont), jnp.float32)
    # Linear(12, 8): PyTorch W is (8, 12); store transposed as (12, 8).
    params["w1"] = 0.3 * jax.random.normal(ks[8], (12, 8), jnp.float32)
    params["b1"] = 0.1 * jax.random.normal(ks[9], (1, 8), jnp.float32)
    # BatchNorm1d(8)
    params["bn2_g"] = 1.0 + 0.1 * jax.random.normal(ks[10], (1, 8), jnp.float32)
    params["bn2_b"] = 0.1 * jax.random.normal(ks[11], (1, 8), jnp.float32)
    params["bn2_m"] = 0.1 * jax.random.normal(ks[12], (1, 8), jnp.float32)
    params["bn2_v"] = 1.0 + 0.1 * jax.random.uniform(ks[13], (1, 8), jnp.float32)
    # Linear(8, 8): stored transposed (in, out) = (8, 8).
    params["w2"] = 0.3 * jax.random.normal(ks[14], (8, 8), jnp.float32)
    params["b2"] = 0.1 * jax.random.normal(ks[15], (1, 8), jnp.float32)
    return params


def fold_params(params, compute_dtype):
    """Fold both eval-mode BatchNorms into the Linear weights/biases.

    bn_cont: xc_bn = xc * sc + tc  ->  absorbed into the last row of W1 / b1.
    bn2:     h_bn  = h  * s2 + t2  ->  absorbed into W2 (row scaling) / b2.
    Returns transposed (feature-major) kernel parameters.
    """
    sc = params["bnc_g"] / jnp.sqrt(params["bnc_v"] + EPS)            # (1, 1)
    tc = params["bnc_b"] - params["bnc_m"] * sc                        # (1, 1)
    w1 = params["w1"]                                                  # (12, 8)
    w1f = jnp.concatenate([w1[:-1, :], sc * w1[-1:, :]], axis=0)       # (12, 8)
    b1f = params["b1"] + tc * w1[-1:, :]                               # (1, 8)

    s2 = params["bn2_g"] / jnp.sqrt(params["bn2_v"] + EPS)             # (1, 8)
    t2 = params["bn2_b"] - params["bn2_m"] * s2                        # (1, 8)
    w2f = s2.T * params["w2"]                                          # (8, 8)
    b2f = t2 @ params["w2"] + params["b2"]                             # (1, 8)

    return {
        "w1t": w1f.T.astype(compute_dtype),     # (8, 12)
        "b1t": b1f.T.astype(jnp.float32),       # (8, 1)
        "w2t": w2f.T.astype(compute_dtype),     # (8, 8)
        "b2t": b2f.T.astype(jnp.float32),       # (8, 1)
    }


def tabular_forward(x_cat, x_cont, params, *, tb=512, compute_dtype=jnp.bfloat16):
    """Eval-mode forward pass.  Returns (B, 8) float32."""
    assert tb % 128 == 0, "tb must be a multiple of 128 (batch rides the lane axis)"

    # Embedding gather + concat with the raw continuous column (glue, kept in
    # XLA); BN_cont is folded into the weights so the raw value is streamed.
    n_tables = len(params["emb"])
    x_emb = jnp.concatenate(
        [params["emb"][i][x_cat[:, i]] for i in range(n_tables)], axis=1
    ).astype(jnp.float32)                                   # (B, 11)
    xc = x_cont.reshape(-1, 1).astype(jnp.float32)          # (B, 1)
    x12 = jnp.concatenate([x_emb, xc], axis=1)              # (B, 12)

    B, n_feat = x12.shape
    fold = fold_params(params, compute_dtype)

    # Feature-major, lane-dense layout: (12, B_pad) in, (8, B_pad) out.
    x_fm = x12.T.astype(compute_dtype)                      # (12, B)
    grid = int(pl.cdiv(B, tb))
    b_pad = grid * tb
    if b_pad != B:
        x_fm = jnp.pad(x_fm, ((0, 0), (0, b_pad - B)))

    out_fm = pl.pallas_call(
        tabular_kernel,
        grid=(grid,),
        in_specs=[
            pl.BlockSpec((n_feat, tb), lambda i: (0, i)),   # streamed activations
            pl.BlockSpec((8, n_feat), lambda i: (0, 0)),    # W1 (folded), constant
            pl.BlockSpec((8, 1), lambda i: (0, 0)),         # b1 (folded), constant
            pl.BlockSpec((8, 8), lambda i: (0, 0)),         # W2 (folded), constant
            pl.BlockSpec((8, 1), lambda i: (0, 0)),         # b2 (folded), constant
        ],
        out_specs=pl.BlockSpec((8, tb), lambda i: (0, i)),
        out_shape=jax.ShapeDtypeStruct((8, b_pad), jnp.float32),
        compiler_params=pltpu.CompilerParams(
            dimension_semantics=("parallel",)),
    )(x_fm, fold["w1t"], fold["b1t"], fold["w2t"], fold["b2t"])

    return out_fm[:, :B].T                                  # (B, 8)


def tabular_forward_ref(x_cat, x_cont, params):
    """Pure-JAX reference of the eval-mode forward pass (unfolded params)."""
    x_emb = jnp.concatenate(
        [params["emb"][i][x_cat[:, i]] for i in range(len(params["emb"]))], axis=1)
    xc = x_cont.reshape(-1, 1)
    xc = ((xc - params["bnc_m"]) / jnp.sqrt(params["bnc_v"] + EPS)
          * params["bnc_g"] + params["bnc_b"])
    x = jnp.concatenate([x_emb, xc], axis=1)                # (B, 12)
    h = jnp.maximum(x @ params["w1"] + params["b1"], 0.0)
    h = ((h - params["bn2_m"]) / jnp.sqrt(params["bn2_v"] + EPS)
         * params["bn2_g"] + params["bn2_b"])
    return h @ params["w2"] + params["b2"]


if __name__ == "__main__":
    # emb_size chosen so n_emb = 3 + 4 + 4 = 11, n_cont = 1  ->  Linear in = 12.
    emb_size = [(5, 3), (4, 4), (3, 4)]
    n_cont = 1

    key = jax.random.PRNGKey(0)
    kp, kc, kx = jax.random.split(key, 3)
    params = make_params(kp, emb_size, n_cont)

    # Two cases: tiny batch (grid=1, padded) and a non-divisible batch that
    # exercises the multi-step pipelined path plus the padded tail.
    for B, tb in [(8, 128), (300, 128)]:
        kcat = jax.random.split(jax.random.fold_in(kc, B), len(emb_size))
        x_cat = jnp.stack(
            [jax.random.randint(kcat[i], (B,), 0, emb_size[i][0])
             for i in range(len(emb_size))], axis=1).astype(jnp.int32)   # (B, 3)
        x_cont = jax.random.normal(jax.random.fold_in(kx, B), (B,), jnp.float32)

        ref = jax.block_until_ready(tabular_forward_ref(x_cat, x_cont, params))

        # f32 path: bit-tight check of the BN folding + layout transform.
        out32 = jax.block_until_ready(
            tabular_forward(x_cat, x_cont, params, tb=tb,
                            compute_dtype=jnp.float32))
        assert out32.shape == (B, 8)
        np.testing.assert_allclose(np.asarray(out32), np.asarray(ref),
                                   rtol=1e-4, atol=1e-4)

        # bf16 streaming path (default): halves HBM traffic, looser tolerance.
        out16 = jax.block_until_ready(
            tabular_forward(x_cat, x_cont, params, tb=tb,
                            compute_dtype=jnp.bfloat16))
        assert out16.shape == (B, 8)
        np.testing.assert_allclose(np.asarray(out16), np.asarray(ref),
                                   rtol=5e-2, atol=5e-2)

    print("KERNEL_OK")
</pallas_src>

<mosaic_0001>
module attributes {stable_mosaic.version = 11 : i64} {
  func.func @tabular_kernel(%arg0: i32, %arg1: memref<12x128xf32, #tpu.memory_space<vmem>>, %arg2: memref<8x12xf32, #tpu.memory_space<vmem>>, %arg3: memref<8x1xf32, #tpu.memory_space<vmem>>, %arg4: memref<8x8xf32, #tpu.memory_space<vmem>>, %arg5: memref<8x1xf32, #tpu.memory_space<vmem>>, %arg6: memref<8x128xf32, #tpu.memory_space<vmem>>) attributes {dimension_semantics = [#tpu.dimension_semantics<parallel>], iteration_bounds = array<i64: 1>, scalar_prefetch = 0 : i64, scratch_operands = 0 : i64, tpu.core_type = #tpu.core_type<tc>, window_params = [{transform_indices = @transform_0, window_bounds = array<i64: 12, 128>}, {pipeline_mode = #tpu.pipeline_mode<synchronous>, transform_indices = @transform_1, window_bounds = array<i64: 8, 12>}, {pipeline_mode = #tpu.pipeline_mode<synchronous>, transform_indices = @transform_2, window_bounds = array<i64: 8, 1>}, {pipeline_mode = #tpu.pipeline_mode<synchronous>, transform_indices = @transform_3, window_bounds = array<i64: 8, 8>}, {pipeline_mode = #tpu.pipeline_mode<synchronous>, transform_indices = @transform_4, window_bounds = array<i64: 8, 1>}, {transform_indices = @transform_5, window_bounds = array<i64: 8, 128>}]} {
    %c0 = arith.constant 0 : index
    %c0_0 = arith.constant 0 : index
    %0 = vector.load %arg1[%c0, %c0_0] : memref<12x128xf32, #tpu.memory_space<vmem>>, vector<12x128xf32>
    %c0_1 = arith.constant 0 : index
    %c0_2 = arith.constant 0 : index
    %1 = vector.load %arg2[%c0_1, %c0_2] : memref<8x12xf32, #tpu.memory_space<vmem>>, vector<8x12xf32>
    %cst = arith.constant dense<0.000000e+00> : vector<8x128xf32>
    %2 = tpu.matmul %1, %0, %cst {dimension_numbers = #tpu.dot_dimension_numbers<[1], [0], [0], [1], [0, 0, 1, 1], [], []>} : vector<8x12xf32>, vector<12x128xf32>, vector<8x128xf32> -> vector<8x128xf32>
    %c0_3 = arith.constant 0 : index
    %c0_4 = arith.constant 0 : index
    %3 = vector.load %arg3[%c0_3, %c0_4] : memref<8x1xf32, #tpu.memory_space<vmem>>, vector<8x1xf32>
    %4 = vector.broadcast %3 : vector<8x1xf32> to vector<8x128xf32>
    %5 = arith.addf %2, %4 : vector<8x128xf32>
    %cst_5 = arith.constant 0.000000e+00 : f32
    %6 = vector.broadcast %cst_5 : f32 to vector<8x128xf32>
    %7 = arith.maximumf %5, %6 : vector<8x128xf32>
    %c0_6 = arith.constant 0 : index
    %c0_7 = arith.constant 0 : index
    %8 = vector.load %arg4[%c0_6, %c0_7] : memref<8x8xf32, #tpu.memory_space<vmem>>, vector<8x8xf32>
    %cst_8 = arith.constant dense<0.000000e+00> : vector<8x128xf32>
    %9 = tpu.matmul %8, %7, %cst_8 {dimension_numbers = #tpu.dot_dimension_numbers<[1], [0], [0], [1], [0, 0, 1, 1], [], []>} : vector<8x8xf32>, vector<8x128xf32>, vector<8x128xf32> -> vector<8x128xf32>
    %c0_9 = arith.constant 0 : index
    %c0_10 = arith.constant 0 : index
    %10 = vector.load %arg5[%c0_9, %c0_10] : memref<8x1xf32, #tpu.memory_space<vmem>>, vector<8x1xf32>
    %11 = vector.broadcast %10 : vector<8x1xf32> to vector<8x128xf32>
    %12 = arith.addf %9, %11 : vector<8x128xf32>
    %c0_11 = arith.constant 0 : index
    %c0_12 = arith.constant 0 : index
    %13 = vector.load %arg6[%c0_11, %c0_12] : memref<8x128xf32, #tpu.memory_space<vmem>>, vector<8x128xf32>
    tpu.vector_store %arg6[%c0_11, %c0_12], %12 {strides = array<i32>} : memref<8x128xf32, #tpu.memory_space<vmem>>, vector<8x128xf32>,
    return
  }
  func.func @transform_0(%arg0: i32) -> (i32, i32) {
    %c0_i32 = arith.constant 0 : i32
    %c0_i32_0 = arith.constant 0 : i32
    return %c0_i32, %arg0 : i32, i32
  }
  func.func @transform_1(%arg0: i32) -> (i32, i32) {
    %c0_i32 = arith.constant 0 : i32
    %c0_i32_0 = arith.constant 0 : i32
    %c0_i32_1 = arith.constant 0 : i32
    return %c0_i32, %c0_i32_0 : i32, i32
  }
  func.func @transform_2(%arg0: i32) -> (i32, i32) {
    %c0_i32 = arith.constant 0 : i32
    %c0_i32_0 = arith.constant 0 : i32
    %c0_i32_1 = arith.constant 0 : i32
    return %c0_i32, %c0_i32_0 : i32, i32
  }
  func.func @transform_3(%arg0: i32) -> (i32, i32) {
    %c0_i32 = arith.constant 0 : i32
    %c0_i32_0 = arith.constant 0 : i32
    %c0_i32_1 = arith.constant 0 : i32
    return %c0_i32, %c0_i32_0 : i32, i32
  }
  func.func @transform_4(%arg0: i32) -> (i32, i32) {
    %c0_i32 = arith.constant 0 : i32
    %c0_i32_0 = arith.constant 0 : i32
    %c0_i32_1 = arith.constant 0 : i32
    return %c0_i32, %c0_i32_0 : i32, i32
  }
  func.func @transform_5(%arg0: i32) -> (i32, i32) {
    %c0_i32 = arith.constant 0 : i32
    %c0_i32_0 = arith.constant 0 : i32
    return %c0_i32, %arg0 : i32, i32
  }
}

</mosaic_0001>

<llo_original>
// kernel: tpu_custom_call.1
$region0: #{tpu_custom_call.1}
  #allocation0 [shape = 'u32[]', space=smem, size = 0x4, offset = 0x4, fixed_abs, tag = 'smem constant byte address 0x4 - core index']
  #allocation1 [shape = 'u32[72,128]{1,0:T(1,128)}', space=vmem, size = 0x9000, scoped, tag = 'internal scratch']
  %s0 = inlined_call_operand.vmem [shape: f32[12,128], index: 0, kind: input, shape index: {}]
  %s1 = inlined_call_operand.hbm [shape: f32[8,12], index: 1, kind: input, shape index: {}]
  %s2 = inlined_call_operand.vmem [shape: f32[8,1], index: 2, kind: input, shape index: {}]
  %s3 = inlined_call_operand.hbm [shape: f32[8,8], index: 3, kind: input, shape index: {}]
  %s4 = inlined_call_operand.vmem [shape: f32[8,1], index: 4, kind: input, shape index: {}]
  %s5 = inlined_call_operand.hbm [shape: f32[8,128], index: 5, kind: output, shape index: {}]
  %s6 = sld [smem:[#allocation0]]
  $region38: #{tpu_custom_call.1} parent=0
    _
  %s8 = ssub.s32 1, %s6
  %s9 = scalar_select 0, %s8, %s6
  $region1: #{tpu_custom_call.1} parent=0
    #allocation2 [shape = 'u8[4096]{0}', space=vmem, size = 0x1000, scoped, tag = 'input window, operand 1, single buffered']
    #allocation3 [shape = 's32[1]{0}', space=sflag, size = 0x4, scoped, tag = 'scoped memory for tpu_custom_call.1']
    #allocation4 [shape = 's32[1]{0}', space=sflag, size = 0x4, scoped, tag = 'scoped memory for tpu_custom_call.1']
    #allocation5 [shape = 'u8[4096]{0}', space=vmem, size = 0x1000, scoped, tag = 'input window, operand 3, single buffered']
    #allocation6 [shape = 's32[1]{0}', space=sflag, size = 0x4, scoped, tag = 'scoped memory for tpu_custom_call.1']
    #allocation7 [shape = 'u8[4096]{0}', space=vmem, size = 0x1000, scoped, tag = 'output window, operand 0, single buffered']
    %10 = vsyncpa [#allocation3], 0
    %11 = vsyncpa [#allocation6], 0
    %12 = vsyncpa [#allocation4], 0
    // Predicated region
    $region2: #{tpu_custom_call.1} parent=1 // pred_check
      _
    $region3: #{tpu_custom_call.1} parent=1 // pred_check_branch
      %14 = sbr.rel (0) target = $region5
    $region4: #{tpu_custom_call.1} parent=1 // pred_region
      _
    $region5: #{tpu_custom_call.1} parent=1 // pred_fallthru
      _
    // Predicated region
    $region6: #{tpu_custom_call.1} parent=1 // pred_check
      _
    $region7: #{tpu_custom_call.1} parent=1 // pred_check_branch
      %16 = sbr.rel (0) target = $region9
    $region8: #{tpu_custom_call.1} parent=1 // pred_region
      %18 = vsyncadd [#allocation3], 0
      %s20 = sshll.u32 %s1, 4
      %s21 = int_to_ptr.hbm [resolvable:$true] %s20
      %s22 = sshll.u32 [#allocation2], 4
      %s23 = int_to_ptr.vmem [resolvable:$true] %s22
      %25 = dma.hbm_to_vmem [thread:$0]  %s21, 128, %s23, [#allocation3]
    $region9: #{tpu_custom_call.1} parent=1 // pred_fallthru
      _
    // Predicated region
    $region10: #{tpu_custom_call.1} parent=1 // pred_check
      _
    $region11: #{tpu_custom_call.1} parent=1 // pred_check_branch
      %27 = sbr.rel (0) target = $region13
    $region12: #{tpu_custom_call.1} parent=1 // pred_region
      _
    $region13: #{tpu_custom_call.1} parent=1 // pred_fallthru
      _
    // Predicated region
    $region14: #{tpu_custom_call.1} parent=1 // pred_check
      _
    $region15: #{tpu_custom_call.1} parent=1 // pred_check_branch
      %29 = sbr.rel (0) target = $region17
    $region16: #{tpu_custom_call.1} parent=1 // pred_region
      %31 = vsyncadd [#allocation6], 0
      %s33 = sshll.u32 %s3, 4
      %s34 = int_to_ptr.hbm [resolvable:$true] %s33
      %s35 = sshll.u32 [#allocation5], 4
      %s36 = int_to_ptr.vmem [resolvable:$true] %s35
      %38 = dma.hbm_to_vmem [thread:$0]  %s34, 128, %s36, [#allocation6]
    $region17: #{tpu_custom_call.1} parent=1 // pred_fallthru
      _
    // Predicated region
    $region18: #{tpu_custom_call.1} parent=1 // pred_check
      _
    $region19: #{tpu_custom_call.1} parent=1 // pred_check_branch
      %40 = sbr.rel (0) target = $region21
    $region20: #{tpu_custom_call.1} parent=1 // pred_region
      _
    $region21: #{tpu_custom_call.1} parent=1 // pred_fallthru
      _
    // Predicated region
    $region22: #{tpu_custom_call.1} parent=1 // pred_check
      _
    $region23: #{tpu_custom_call.1} parent=1 // pred_check_branch
      %42 = sbr.rel (0) target = $region25
    $region24: #{tpu_custom_call.1} parent=1 // pred_region
      %44 = dma.done [#allocation3], 128
    $region25: #{tpu_custom_call.1} parent=1 // pred_fallthru
      _
    // Predicated region
    $region26: #{tpu_custom_call.1} parent=1 // pred_check
      _
    $region27: #{tpu_custom_call.1} parent=1 // pred_check_branch
      %46 = sbr.rel (0) target = $region29
    $region28: #{tpu_custom_call.1} parent=1 // pred_region
      %48 = dma.done [#allocation6], 128
    $region29: #{tpu_custom_call.1} parent=1 // pred_fallthru
      _
    %v49 = vld [vmem:[%s0] sm:$0xff]
    %v50 = vld [vmem:[%s0 + $0x8] sm:$0xf]
    %v51 = vld [vmem:[#allocation2] sm:$0xff]
    %v52 = vld [vmem:[%s2] sm:$0xff]
    %54 = vset.pattern.permute.xlu0 0
    %55 = vperm.xlu0 %54, %v52
    %v56 = vpop.permute.xlu0 %55
    %vm58 = vcmask 97280
    %v60 = vsel %vm58, %v51, 0
    %vm62 = vcmask 1043456
    %v64 = vsel %vm62, %v50, 0
    %66 = vmatpush.msra.mxu0 0.0
    %67 = vmatpush.msra.mxu0 0.0
    %68 = vmatpush.msra.mxu0 0.0
    %69 = vmatpush.msra.mxu0 0.0
    %70 = vmatpush.msra.mxu0 0.0
    %71 = vmatpush.msra.mxu0 0.0
    %72 = vmatpush.msra.mxu0 0.0
    %73 = vmatpush.msra.mxu0 0.0
    %74 = vmatpush.msra.mxu0 0.0
    %75 = vmatpush.msra.mxu0 0.0
    %76 = vmatpush.msra.mxu0 0.0
    %77 = vmatpush.msra.mxu0 0.0
    %78 = vmatpush.msra.mxu0 0.0
    %79 = vmatpush.msra.mxu0 0.0
    %80 = vmatpush.msra.mxu0 %v64
    %81 = vmatpush.msra.mxu0 %v49
    %82 = vmatmul.f32.gmra.mxu0 %v60
    %v83 = vpop.f32.mrf.mxu0
    %v84 = vadd.f32 %v56, %v83
    %85 = vdwg.mxu0
    %v86 = vmax.f32 %v84, 0.0
    %v87 = vld [vmem:[#allocation5] sm:$0xff]
    %v88 = vld [vmem:[%s4] sm:$0xff]
    %90 = vset.pattern.permute.xlu0 0
    %91 = vperm.xlu0 %90, %v88
    %v92 = vpop.permute.xlu0 %91
    %vm94 = vcmask 64512
    %v96 = vsel %vm94, %v87, 0
    %98 = vmatpush.msra.mxu0 0.0
    %99 = vmatpush.msra.mxu0 0.0
    %100 = vmatpush.msra.mxu0 0.0
    %101 = vmatpush.msra.mxu0 0.0
    %102 = vmatpush.msra.mxu0 0.0
    %103 = vmatpush.msra.mxu0 0.0
    %104 = vmatpush.msra.mxu0 0.0
    %105 = vmatpush.msra.mxu0 0.0
    %106 = vmatpush.msra.mxu0 0.0
    %107 = vmatpush.msra.mxu0 0.0
    %108 = vmatpush.msra.mxu0 0.0
    %109 = vmatpush.msra.mxu0 0.0
    %110 = vmatpush.msra.mxu0 0.0
    %111 = vmatpush.msra.mxu0 0.0
    %112 = vmatpush.msra.mxu0 0.0
    %113 = vmatpush.msra.mxu0 %v86
    %114 = vmatmul.f32.gmra.mxu0 %v96
    %v115 = vpop.f32.mrf.mxu0
    %v116 = vadd.f32 %v92, %v115
    %117 = vdwg.mxu0
    %118 = vst [vmem:[#allocation7] sm:$0xff] %v116
    // Predicated region
    $region30: #{tpu_custom_call.1} parent=1 // pred_check
      _
    $region31: #{tpu_custom_call.1} parent=1 // pred_check_branch
      %120 = sbr.rel (0) target = $region33
    $region32: #{tpu_custom_call.1} parent=1 // pred_region
      %122 = vsyncadd [#allocation4], 0
      %s124 = sshll.u32 [#allocation7], 4
      %s125 = int_to_ptr.vmem [resolvable:$true] %s124
      %s126 = sshll.u32 %s5, 4
      %s127 = int_to_ptr.hbm [resolvable:$true] %s126
      %129 = dma.vmem_to_hbm [thread:$0]  %s125, 128, %s127, [#allocation4]
    $region33: #{tpu_custom_call.1} parent=1 // pred_fallthru
      _
    // Predicated region
    $region34: #{tpu_custom_call.1} parent=1 // pred_check
      _
    $region35: #{tpu_custom_call.1} parent=1 // pred_check_branch
      %131 = sbr.rel (0) target = $region37
    $region36: #{tpu_custom_call.1} parent=1 // pred_region
      %133 = dma.done [#allocation4], 128
    $region37: #{tpu_custom_call.1} parent=1 // pred_fallthru
      _
    %134 = vsyncpa [#allocation3], 1
    %135 = vsyncpa [#allocation6], 1
    %136 = vsyncpa [#allocation4], 1

</llo_original>
